<compile_context>
chip_gen: v7x
topology: tpu7x:2x2x1
jax: 0.10.0
libtpu: 0.0.40
codegen_flags: <defaults>
</compile_context>

<pallas_src>
import functools

import jax
import jax.numpy as jnp
from jax.experimental import pallas as pl
from jax.experimental.pallas import tpu as pltpu


def _round_up(x, m):
    return ((x + m - 1) // m) * m


# ---------------------------------------------------------------------------
# Kernels
# ---------------------------------------------------------------------------
def _single_block_kernel(x_ref, mt_ref, o_ref):
    # Whole problem is resident in VMEM: one MXU pass, f32 accumulation.
    o_ref[...] = jnp.dot(
        x_ref[...], mt_ref[...], preferred_element_type=jnp.float32
    ).astype(o_ref.dtype)


def _tiled_matmul_kernel(x_ref, mt_ref, o_ref):
    # The output BlockSpec is invariant over the k axis, so o_ref (f32) is
    # resident across the reduction: zero it on the first k step and
    # accumulate directly into it (no extra VMEM scratch needed).
    @pl.when(pl.program_id(2) == 0)
    def _():
        o_ref[...] = jnp.zeros_like(o_ref)

    o_ref[...] += jnp.dot(
        x_ref[...], mt_ref[...], preferred_element_type=jnp.float32
    )


# ---------------------------------------------------------------------------
# Wrapper
# ---------------------------------------------------------------------------
@functools.partial(jax.jit, static_argnames=("tm", "tn", "tk", "single_block"))
def memory_logits(inputs, mem_t, *, tm=256, tn=512, tk=1024, single_block=None):
    """logits = inputs @ mem_t, where mem_t is the (F, C) pre-transposed bank.

    Equivalent to PyTorch `inputs.mm(memory.t())` with memory of shape (C, F).
    """
    B, F = inputs.shape
    F2, C = mem_t.shape
    assert F == F2, "feature dims must match"

    # bf16 operands, f32 accumulation (memory-bound for small B -> ~2x bytes).
    x = inputs.astype(jnp.bfloat16)
    mt = mem_t.astype(jnp.bfloat16)

    flops = 2 * B * C * F
    bytes_accessed = (B * F + F * C) * 2 + B * C * 4
    cost = pl.CostEstimate(
        flops=flops, transcendentals=0, bytes_accessed=bytes_accessed
    )

    # ---- small-problem fast path: single grid point, everything in VMEM ----
    if single_block is None:
        single_block = bytes_accessed <= 4 * 1024 * 1024
    if single_block:
        return pl.pallas_call(
            _single_block_kernel,
            out_shape=jax.ShapeDtypeStruct((B, C), jnp.float32),
            cost_estimate=cost,
        )(x, mt)

    # ---- tiled path ---------------------------------------------------------
    # Clamp tiles to the (rounded-up) problem; bf16 needs the second-to-last
    # block dim to be a multiple of 16 and the last a multiple of 128.
    tm = max(16, min(tm, _round_up(B, 16)))
    tn = max(128, min(tn, _round_up(C, 128)))
    tk = max(128, min(tk, _round_up(F, 128)))

    Bp, Cp, Fp = _round_up(B, tm), _round_up(C, tn), _round_up(F, tk)
    if (Bp, Fp) != (B, F):
        x = jnp.pad(x, ((0, Bp - B), (0, Fp - F)))
    if (Fp, Cp) != (F, C):
        mt = jnp.pad(mt, ((0, Fp - F), (0, Cp - C)))

    grid = (Bp // tm, Cp // tn, Fp // tk)

    # Double-buffered bf16 input tiles + double-buffered f32 output tile,
    # with headroom; capped at 64 MiB so it is legal on v7x as well.
    vmem_need = 2 * (tm * tk + tk * tn) * 2 + 2 * tm * tn * 4
    vmem_limit = min(64 * 1024 * 1024, max(vmem_need + (4 << 20), 16 << 20))

    out = pl.pallas_call(
        _tiled_matmul_kernel,
        out_shape=jax.ShapeDtypeStruct((Bp, Cp), jnp.float32),
        grid_spec=pltpu.PrefetchScalarGridSpec(
            num_scalar_prefetch=0,
            grid=grid,
            in_specs=[
                pl.BlockSpec((tm, tk), lambda i, j, k: (i, k)),  # inputs (M, K)
                pl.BlockSpec((tk, tn), lambda i, j, k: (k, j)),  # mem_t  (K, N)
            ],
            out_specs=pl.BlockSpec((tm, tn), lambda i, j, k: (i, j)),
        ),
        compiler_params=pltpu.CompilerParams(
            dimension_semantics=("parallel", "parallel", "arbitrary"),
            vmem_limit_bytes=int(vmem_limit),
        ),
        cost_estimate=cost,
    )(x, mt)
    return out[:B, :C]


# ---------------------------------------------------------------------------
# Module port
# ---------------------------------------------------------------------------
class Graph:
    """JAX/Pallas port of lib/models/graph_with_cpu.py::Graph (forward only)."""

    def __init__(self, num_features, num_classes, alpha=0.01, key=None):
        self.num_features = num_features
        self.num_classes = num_classes
        self.alpha = alpha
        # PyTorch initializes mem to zeros; fill deterministically (as if rows
        # had been `store()`d) and L2-normalize rows like the memory-update
        # rule, so the matmul kernel is exercised with non-trivial data.
        if key is None:
            key = jax.random.PRNGKey(0)
        mem = jax.random.normal(key, (num_classes, num_features), dtype=jnp.float32)
        mem = mem / jnp.linalg.norm(mem, axis=1, keepdims=True)
        self.mem = mem  # (C, F) f32 — API parity with the PyTorch parameter
        # Pre-transpose once and store bf16: the bank is a persistent
        # parameter, so the transpose/cast is paid once, not per call.
        self.mem_t = mem.T.astype(jnp.bfloat16)  # (F, C) bf16
        # TODO(synk): BatchNorm1d `global_norm` only feeds global_normalisation(),
        # never forward(); not translated. Custom backward (memory row update +
        # renorm) is training-only and not part of the forward pass.

    def __call__(self, inputs, targets=None, epoch=None):
        # `targets` is unused in the forward pass (it only feeds the custom
        # backward of MemoryLayer), mirroring the PyTorch semantics.
        return memory_logits(inputs, self.mem_t)


if __name__ == "__main__":
    key = jax.random.PRNGKey(0)
    k_in, k_mem, k_in2, k_mem2 = jax.random.split(key, 4)

    # ---- demo 1: small module shape -> single-block (whole-in-VMEM) path ----
    batch, num_features, num_classes = 8, 256, 128
    inputs = jax.random.normal(k_in, (batch, num_features), dtype=jnp.float32)
    targets = jnp.arange(batch, dtype=jnp.int32)  # unused in forward

    graph = Graph(num_features, num_classes, key=k_mem)
    logits = jax.block_until_ready(graph(inputs, targets))

    ref = jnp.dot(
        inputs.astype(jnp.bfloat16).astype(jnp.float32),
        graph.mem_t.astype(jnp.float32),
        precision=jax.lax.Precision.HIGHEST,
    )
    assert logits.shape == (batch, num_classes)
    assert jnp.allclose(logits, ref, atol=1e-2, rtol=1e-2), "mismatch (single-block)"

    # ---- demo 2: uneven shapes forced through the tiled/padded path ---------
    bb, ff, cc = 24, 300, 200
    x2 = jax.random.normal(k_in2, (bb, ff), dtype=jnp.float32)
    m2 = jax.random.normal(k_mem2, (cc, ff), dtype=jnp.float32)
    m2 = m2 / jnp.linalg.norm(m2, axis=1, keepdims=True)
    m2_t = m2.T.astype(jnp.bfloat16)

    out2 = jax.block_until_ready(
        memory_logits(x2, m2_t, tm=16, tn=128, tk=128, single_block=False)
    )
    ref2 = jnp.dot(
        x2.astype(jnp.bfloat16).astype(jnp.float32),
        m2_t.astype(jnp.float32),
        precision=jax.lax.Precision.HIGHEST,
    )
    assert out2.shape == (bb, cc)
    assert jnp.allclose(out2, ref2, atol=1e-2, rtol=1e-2), "mismatch (tiled/padded)"

    print("KERNEL_OK")
</pallas_src>

<mosaic_0001>
module attributes {stable_mosaic.version = 11 : i64} {
  func.func @_single_block_kernel(%arg0: memref<8x256xbf16, #tpu.memory_space<vmem>>, %arg1: memref<256x128xbf16, #tpu.memory_space<vmem>>, %arg2: memref<8x128xf32, #tpu.memory_space<vmem>>) attributes {dimension_semantics = [], scalar_prefetch = 0 : i64, scratch_operands = 0 : i64, tpu.core_type = #tpu.core_type<tc>} {
    %c0 = arith.constant 0 : index
    %c0_0 = arith.constant 0 : index
    %0 = vector.load %arg0[%c0, %c0_0] : memref<8x256xbf16, #tpu.memory_space<vmem>>, vector<8x256xbf16>
    %c0_1 = arith.constant 0 : index
    %c0_2 = arith.constant 0 : index
    %1 = vector.load %arg1[%c0_1, %c0_2] : memref<256x128xbf16, #tpu.memory_space<vmem>>, vector<256x128xbf16>
    %cst = arith.constant dense<0.000000e+00> : vector<8x128xf32>
    %2 = tpu.matmul %0, %1, %cst {dimension_numbers = #tpu.dot_dimension_numbers<[1], [0], [0], [1], [0, 0, 1, 1], [], []>} : vector<8x256xbf16>, vector<256x128xbf16>, vector<8x128xf32> -> vector<8x128xf32>
    %c0_3 = arith.constant 0 : index
    %c0_4 = arith.constant 0 : index
    %3 = vector.load %arg2[%c0_3, %c0_4] : memref<8x128xf32, #tpu.memory_space<vmem>>, vector<8x128xf32>
    tpu.vector_store %arg2[%c0_3, %c0_4], %2 {strides = array<i32>} : memref<8x128xf32, #tpu.memory_space<vmem>>, vector<8x128xf32>,
    return
  }
}

</mosaic_0001>

<llo_original>
// kernel: memory_logits.1
$region0: #{memory_logits.1}
  #allocation0 [shape = 'u32[]', space=smem, size = 0x4, offset = 0x4, fixed_abs, tag = 'smem constant byte address 0x4 - core index']
  #allocation1 [shape = 'u32[144,128]{1,0:T(1,128)}', space=vmem, size = 0x12000, scoped, tag = 'internal scratch']
  %s0 = inlined_call_operand.vmem [shape: bf16[8,256], index: 0, kind: input, shape index: {}]
  %s1 = inlined_call_operand.hbm [shape: bf16[256,128], index: 1, kind: input, shape index: {}]
  %s2 = inlined_call_operand.hbm [shape: f32[8,128], index: 2, kind: output, shape index: {}]
  %s3 = sld [smem:[#allocation0]]
  $region22: #{memory_logits.1} parent=0
    _
  %s5 = ssub.s32 1, %s3
  %s6 = scalar_select 0, %s5, %s3
  $region1: #{memory_logits.1} parent=0
    #allocation2 [shape = 'u8[65536]{0}', space=vmem, size = 0x10000, scoped, tag = 'input window, operand 1, single buffered']
    #allocation3 [shape = 's32[1]{0}', space=sflag, size = 0x4, scoped, tag = 'scoped memory for memory_logits.1']
    #allocation4 [shape = 's32[1]{0}', space=sflag, size = 0x4, scoped, tag = 'scoped memory for memory_logits.1']
    #allocation5 [shape = 'u8[4096]{0}', space=vmem, size = 0x1000, scoped, tag = 'output window, operand 0, single buffered']
    %7 = vsyncpa [#allocation3], 0
    %8 = vsyncpa [#allocation4], 0
    // Predicated region
    $region2: #{memory_logits.1} parent=1 // pred_check
      _
    $region3: #{memory_logits.1} parent=1 // pred_check_branch
      %10 = sbr.rel (0) target = $region5
    $region4: #{memory_logits.1} parent=1 // pred_region
      _
    $region5: #{memory_logits.1} parent=1 // pred_fallthru
      _
    // Predicated region
    $region6: #{memory_logits.1} parent=1 // pred_check
      _
    $region7: #{memory_logits.1} parent=1 // pred_check_branch
      %12 = sbr.rel (0) target = $region9
    $region8: #{memory_logits.1} parent=1 // pred_region
      %s14 = ssub.s32 2048, 2048
      %15 = vsyncadd [#allocation3], %s14
      %s16 = sshll.u32 [#allocation2], 4
      %s17 = int_to_ptr.vmem [resolvable:$true] %s16
      %22 = dma.hbm_to_vmem [thread:$0]  %s1, 2048, %s17, [#allocation3], 64, 64, 4
    $region9: #{memory_logits.1} parent=1 // pred_fallthru
      _
    // Predicated region
    $region10: #{memory_logits.1} parent=1 // pred_check
      _
    $region11: #{memory_logits.1} parent=1 // pred_check_branch
      %24 = sbr.rel (0) target = $region13
    $region12: #{memory_logits.1} parent=1 // pred_region
      %25 = dma.done [#allocation3], 2048
    $region13: #{memory_logits.1} parent=1 // pred_fallthru
      _
    %v27 = vld [vmem:[%s0] sm:$0xff]
    %v28 = vld [vmem:[#allocation2] sm:$0xf]
    %v29 = vld [vmem:[#allocation2 + $0x4] sm:$0xf]
    %v30 = vld [vmem:[#allocation2 + $0x8] sm:$0xf]
    %v31 = vld [vmem:[#allocation2 + $0xc] sm:$0xf]
    %v32 = vld [vmem:[#allocation2 + $0x10] sm:$0xf]
    %v33 = vld [vmem:[#allocation2 + $0x14] sm:$0xf]
    %v34 = vld [vmem:[#allocation2 + $0x18] sm:$0xf]
    %v35 = vld [vmem:[#allocation2 + $0x1c] sm:$0xf]
    %v36 = vld [vmem:[#allocation2 + $0x20] sm:$0xf]
    %v37 = vld [vmem:[#allocation2 + $0x24] sm:$0xf]
    %v38 = vld [vmem:[#allocation2 + $0x28] sm:$0xf]
    %v39 = vld [vmem:[#allocation2 + $0x2c] sm:$0xf]
    %v40 = vld [vmem:[#allocation2 + $0x30] sm:$0xf]
    %v41 = vld [vmem:[#allocation2 + $0x34] sm:$0xf]
    %v42 = vld [vmem:[#allocation2 + $0x38] sm:$0xf]
    %v43 = vld [vmem:[#allocation2 + $0x3c] sm:$0xf]
    %v44 = vld [vmem:[#allocation2 + $0x40] sm:$0xf]
    %v45 = vld [vmem:[#allocation2 + $0x44] sm:$0xf]
    %v46 = vld [vmem:[#allocation2 + $0x48] sm:$0xf]
    %v47 = vld [vmem:[#allocation2 + $0x4c] sm:$0xf]
    %v48 = vld [vmem:[#allocation2 + $0x50] sm:$0xf]
    %v49 = vld [vmem:[#allocation2 + $0x54] sm:$0xf]
    %v50 = vld [vmem:[#allocation2 + $0x58] sm:$0xf]
    %v51 = vld [vmem:[#allocation2 + $0x5c] sm:$0xf]
    %v52 = vld [vmem:[#allocation2 + $0x60] sm:$0xf]
    %v53 = vld [vmem:[#allocation2 + $0x64] sm:$0xf]
    %v54 = vld [vmem:[#allocation2 + $0x68] sm:$0xf]
    %v55 = vld [vmem:[#allocation2 + $0x6c] sm:$0xf]
    %v56 = vld [vmem:[#allocation2 + $0x70] sm:$0xf]
    %v57 = vld [vmem:[#allocation2 + $0x74] sm:$0xf]
    %v58 = vld [vmem:[#allocation2 + $0x78] sm:$0xf]
    %v59 = vld [vmem:[#allocation2 + $0x7c] sm:$0xf]
    %v61 = vunpack.c.l.b16 %v27
    %v62 = vunpack.c.h.b16 %v27
    %v63 = vpack.c.b16 %v61, %v61
    %v64 = vpack.c.b16 %v62, %v62
    %v99 = vunpack.c.l.b16 %v28
    %v100 = vunpack.c.l.b16 %v29
    %v101 = vunpack.c.l.b16 %v30
    %v102 = vunpack.c.l.b16 %v31
    %v103 = vunpack.c.l.b16 %v32
    %v104 = vunpack.c.l.b16 %v33
    %v105 = vunpack.c.l.b16 %v34
    %v106 = vunpack.c.l.b16 %v35
    %v107 = vunpack.c.l.b16 %v36
    %v108 = vunpack.c.l.b16 %v37
    %v109 = vunpack.c.l.b16 %v38
    %v110 = vunpack.c.l.b16 %v39
    %v111 = vunpack.c.l.b16 %v40
    %v112 = vunpack.c.l.b16 %v41
    %v113 = vunpack.c.l.b16 %v42
    %v114 = vunpack.c.l.b16 %v43
    %v115 = vunpack.c.l.b16 %v44
    %v116 = vunpack.c.l.b16 %v45
    %v117 = vunpack.c.l.b16 %v46
    %v118 = vunpack.c.l.b16 %v47
    %v119 = vunpack.c.l.b16 %v48
    %v120 = vunpack.c.l.b16 %v49
    %v121 = vunpack.c.l.b16 %v50
    %v122 = vunpack.c.l.b16 %v51
    %v123 = vunpack.c.l.b16 %v52
    %v124 = vunpack.c.l.b16 %v53
    %v125 = vunpack.c.l.b16 %v54
    %v126 = vunpack.c.l.b16 %v55
    %v127 = vunpack.c.l.b16 %v56
    %v128 = vunpack.c.l.b16 %v57
    %v129 = vunpack.c.l.b16 %v58
    %v130 = vunpack.c.l.b16 %v59
    %v131 = vpack.c.b16 %v100, %v99
    %v132 = vpack.c.b16 %v102, %v101
    %v133 = vpack.c.b16 %v104, %v103
    %v134 = vpack.c.b16 %v106, %v105
    %v135 = vpack.c.b16 %v108, %v107
    %v136 = vpack.c.b16 %v110, %v109
    %v137 = vpack.c.b16 %v112, %v111
    %v138 = vpack.c.b16 %v114, %v113
    %v139 = vpack.c.b16 %v116, %v115
    %v140 = vpack.c.b16 %v118, %v117
    %v141 = vpack.c.b16 %v120, %v119
    %v142 = vpack.c.b16 %v122, %v121
    %v143 = vpack.c.b16 %v124, %v123
    %v144 = vpack.c.b16 %v126, %v125
    %v145 = vpack.c.b16 %v128, %v127
    %v146 = vpack.c.b16 %v130, %v129
    %163 = vmatprep.subr.bf16.mxu0 0
    %164 = vmatpush1.bf16.msra.mxu0 %v131
    %165 = vmatprep.subr.bf16.mxu0 0
    %166 = vmatpush1.bf16.msra.mxu0 %v132
    %167 = vmatprep.subr.bf16.mxu0 0
    %168 = vmatpush1.bf16.msra.mxu0 %v133
    %169 = vmatprep.subr.bf16.mxu0 0
    %170 = vmatpush1.bf16.msra.mxu0 %v134
    %171 = vmatprep.subr.bf16.mxu0 0
    %172 = vmatpush1.bf16.msra.mxu0 %v135
    %173 = vmatprep.subr.bf16.mxu0 0
    %174 = vmatpush1.bf16.msra.mxu0 %v136
    %175 = vmatprep.subr.bf16.mxu0 0
    %176 = vmatpush1.bf16.msra.mxu0 %v137
    %177 = vmatprep.subr.bf16.mxu0 0
    %178 = vmatpush1.bf16.msra.mxu0 %v138
    %179 = vmatprep.subr.bf16.mxu0 0
    %180 = vmatpush1.bf16.msra.mxu0 %v139
    %181 = vmatprep.subr.bf16.mxu0 0
    %182 = vmatpush1.bf16.msra.mxu0 %v140
    %183 = vmatprep.subr.bf16.mxu0 0
    %184 = vmatpush1.bf16.msra.mxu0 %v141
    %185 = vmatprep.subr.bf16.mxu0 0
    %186 = vmatpush1.bf16.msra.mxu0 %v142
    %187 = vmatprep.subr.bf16.mxu0 0
    %188 = vmatpush1.bf16.msra.mxu0 %v143
    %189 = vmatprep.subr.bf16.mxu0 0
    %190 = vmatpush1.bf16.msra.mxu0 %v144
    %191 = vmatprep.subr.bf16.mxu0 0
    %192 = vmatpush1.bf16.msra.mxu0 %v145
    %193 = vmatprep.subr.bf16.mxu0 0
    %194 = vmatpush1.bf16.msra.mxu0 %v146
    %195 = vmatprep.mubr.bf16.mxu0 %v64
    %196 = vmatmul.mubr.bf16.gmra.mrb[0].mxu0 %v63
    %v197 = vpop.f32.mrb[0].mxu0
    %v198 = vadd.f32 0.0, %v197
    %v199 = vpop.f32.mrb[0].mxu0
    %v200 = vpop.f32.mrb[0].mxu0
    %v201 = vpop.f32.mrb[0].mxu0
    %202 = vdwg.mxu0
    %203 = vst [vmem:[#allocation5] sm:$0xff] %v198
    // Predicated region
    $region14: #{memory_logits.1} parent=1 // pred_check
      _
    $region15: #{memory_logits.1} parent=1 // pred_check_branch
      %205 = sbr.rel (0) target = $region17
    $region16: #{memory_logits.1} parent=1 // pred_region
      %s207 = ssub.s32 128, 128
      %208 = vsyncadd [#allocation4], %s207
      %s210 = sshll.u32 [#allocation5], 4
      %s211 = int_to_ptr.vmem [resolvable:$true] %s210
      %213 = dma.vmem_to_hbm [thread:$0]  %s211, 128, %s2, [#allocation4]
    $region17: #{memory_logits.1} parent=1 // pred_fallthru
      _
    // Predicated region
    $region18: #{memory_logits.1} parent=1 // pred_check
      _
    $region19: #{memory_logits.1} parent=1 // pred_check_branch
      %215 = sbr.rel (0) target = $region21
    $region20: #{memory_logits.1} parent=1 // pred_region
      %216 = dma.done [#allocation4], 128
    $region21: #{memory_logits.1} parent=1 // pred_fallthru
      _
    %217 = vsyncpa [#allocation3], 1
    %218 = vsyncpa [#allocation4], 1

</llo_original>
